<compile_context>
chip_gen: v7x
topology: tpu7x:2x2x1
jax: 0.10.0
libtpu: 0.0.40
codegen_flags: <defaults>
</compile_context>

<pallas_src>
import functools

import jax
import jax.numpy as jnp
from jax.experimental import pallas as pl
from jax.experimental.pallas import tpu as pltpu


def cnn_kernel(x_ref, w_ref, b_ref, o_ref, *, k_size, l_out):
    # x_ref: (1, L, C)   bf16  one batch row, time on sublanes, channels on lanes
    # w_ref: (C*K, F)    bf16  im2col-flattened weights
    # b_ref: (1, F)      f32
    # o_ref: (1, 8, Fp)  f32   lane-dense padded output tile (Fp multiple of 128)
    x = x_ref[0]            # (L, C)
    w = w_ref[...]          # (C*K, F)
    b = b_ref[...]          # (1, F)

    # im2col unfold: cols[t, k*C + c] = x[t + k, c]  -> (L_out, C*K)
    cols = jnp.concatenate(
        [x[k:k + l_out, :] for k in range(k_size)], axis=-1)

    # Single MXU contraction, bf16 inputs, f32 accumulate.
    acc = jnp.dot(cols, w, preferred_element_type=jnp.float32)   # (L_out, F)

    # Max over time FIRST, then bias + ReLU on the (1, F) result.
    res = jnp.max(acc, axis=0, keepdims=True)                    # (1, F)
    res = jnp.maximum(res + b, 0.0)                              # (1, F)

    # Lane-dense store: pad F -> Fp lanes, replicate over the 8 sublanes.
    lane_pad = o_ref.shape[-1] - res.shape[-1]
    if lane_pad:
        row = jnp.concatenate(
            [res, jnp.zeros((1, lane_pad), jnp.float32)], axis=-1)
    else:
        row = res
    o_ref[...] = jnp.broadcast_to(row[None], o_ref.shape)


def cnn_forward(x, w, b):
    """x: (N, C_in, L) f32, w: (F, C_in, K) f32, b: (F,) f32 -> (N, F) f32."""
    n, c, l = x.shape
    f, _, k = w.shape
    l_out = l - k + 1

    # Wrapper-side layout plumbing (not compute): put time on sublanes and
    # channels on lanes for x; flatten weights to (C*K, F) matching the
    # in-kernel unfold order; cast both to bf16 (MXU peak dtype, half DMA).
    x_t = jnp.transpose(x, (0, 2, 1)).astype(jnp.bfloat16)        # (N, L, C)
    w_flat = jnp.transpose(w, (2, 1, 0)).reshape(k * c, f)        # (C*K, F)
    w_flat = w_flat.astype(jnp.bfloat16)
    b2 = b.reshape(1, f).astype(jnp.float32)                      # (1, F)

    f_pad = max(128, ((f + 127) // 128) * 128)                    # lane-dense
    kernel = functools.partial(cnn_kernel, k_size=k, l_out=l_out)

    out_padded = pl.pallas_call(
        kernel,
        grid=(n,),
        out_shape=jax.ShapeDtypeStruct((n, 8, f_pad), jnp.float32),
        in_specs=[
            pl.BlockSpec((1, l, c), lambda i: (i, 0, 0)),         # x, row i
            pl.BlockSpec((k * c, f), lambda i: (0, 0)),           # weights
            pl.BlockSpec((1, f), lambda i: (0, 0)),               # bias
        ],
        out_specs=pl.BlockSpec((1, 8, f_pad), lambda i: (i, 0, 0)),
        compiler_params=pltpu.CompilerParams(
            dimension_semantics=("parallel",)),                   # megacore (v7x)
    )(x_t, w_flat, b2)

    return out_padded[:, 0, :f]


if __name__ == "__main__":
    # Small shapes consistent with CNN(input_dim, num_filters, kernel_size):
    #   input_dim (C_in) = 4, num_filters (F) = 8, kernel_size (K) = 5,
    #   batch N = 2, sequence length L = 16.
    N, C_IN, L = 2, 4, 16
    F_OUT, K = 8, 5

    key = jax.random.PRNGKey(0)
    kx, kw, kb = jax.random.split(key, 3)

    x = jax.random.normal(kx, (N, C_IN, L), jnp.float32)
    # Deterministic init mimicking PyTorch Conv1d's uniform(-1/sqrt(C*K), +1/sqrt(C*K)).
    bound = 1.0 / (C_IN * K) ** 0.5
    w = jax.random.uniform(kw, (F_OUT, C_IN, K), jnp.float32, -bound, bound)
    b = jax.random.uniform(kb, (F_OUT,), jnp.float32, -bound, bound)

    out = jax.block_until_ready(cnn_forward(x, w, b))
    assert out.shape == (N, F_OUT)

    # Pure-JAX reference of the PyTorch forward. The kernel feeds the MXU bf16
    # operands (f32 accumulate), so the reference uses bf16-rounded inputs to
    # match that numerics exactly up to accumulation order.
    xb = x.astype(jnp.bfloat16).astype(jnp.float32)
    wb = w.astype(jnp.bfloat16).astype(jnp.float32)
    conv = jax.lax.conv_general_dilated(
        xb, wb, window_strides=(1,), padding="VALID",
        dimension_numbers=("NCH", "OIH", "NCH"),
        precision=jax.lax.Precision.HIGHEST)
    conv = conv + b[None, :, None]
    ref = jnp.max(jnp.maximum(conv, 0.0), axis=2)
    assert jnp.allclose(out, ref, atol=1e-4, rtol=1e-4), "mismatch vs reference"

    print("KERNEL_OK")
</pallas_src>

<mosaic_0001>
module attributes {stable_mosaic.version = 11 : i64} {
  func.func @cnn_kernel(%arg0: i32, %arg1: memref<1x16x4xbf16, #tpu.memory_space<vmem>>, %arg2: memref<20x8xbf16, #tpu.memory_space<vmem>>, %arg3: memref<1x8xf32, #tpu.memory_space<vmem>>, %arg4: memref<1x8x128xf32, #tpu.memory_space<vmem>>) attributes {dimension_semantics = [#tpu.dimension_semantics<parallel>], iteration_bounds = array<i64: 2>, scalar_prefetch = 0 : i64, scratch_operands = 0 : i64, tpu.core_type = #tpu.core_type<tc>, window_params = [{transform_indices = @transform_0, window_bounds = array<i64: 1, 16, 4>}, {pipeline_mode = #tpu.pipeline_mode<synchronous>, transform_indices = @transform_1, window_bounds = array<i64: 20, 8>}, {pipeline_mode = #tpu.pipeline_mode<synchronous>, transform_indices = @transform_2, window_bounds = array<i64: 1, 8>}, {transform_indices = @transform_3, window_bounds = array<i64: 1, 8, 128>}]} {
    %c0 = arith.constant 0 : index
    %c0_0 = arith.constant 0 : index
    %c0_1 = arith.constant 0 : index
    %0 = vector.load %arg1[%c0, %c0_0, %c0_1] : memref<1x16x4xbf16, #tpu.memory_space<vmem>>, vector<1x16x4xbf16>
    %1 = vector.shape_cast %0 : vector<1x16x4xbf16> to vector<16x4xbf16>
    %c0_2 = arith.constant 0 : index
    %c0_3 = arith.constant 0 : index
    %2 = vector.load %arg2[%c0_2, %c0_3] : memref<20x8xbf16, #tpu.memory_space<vmem>>, vector<20x8xbf16>
    %c0_4 = arith.constant 0 : index
    %c0_5 = arith.constant 0 : index
    %3 = vector.load %arg3[%c0_4, %c0_5] : memref<1x8xf32, #tpu.memory_space<vmem>>, vector<1x8xf32>
    %4 = vector.extract_strided_slice %1 {offsets = [0, 0], sizes = [12, 4], strides = [1, 1]} : vector<16x4xbf16> to vector<12x4xbf16>
    %5 = vector.extract_strided_slice %1 {offsets = [1, 0], sizes = [12, 4], strides = [1, 1]} : vector<16x4xbf16> to vector<12x4xbf16>
    %6 = vector.extract_strided_slice %1 {offsets = [2, 0], sizes = [12, 4], strides = [1, 1]} : vector<16x4xbf16> to vector<12x4xbf16>
    %7 = vector.extract_strided_slice %1 {offsets = [3, 0], sizes = [12, 4], strides = [1, 1]} : vector<16x4xbf16> to vector<12x4xbf16>
    %8 = vector.extract_strided_slice %1 {offsets = [4, 0], sizes = [12, 4], strides = [1, 1]} : vector<16x4xbf16> to vector<12x4xbf16>
    %9 = tpu.concatenate %4, %5, %6, %7, %8 in 1 : vector<12x4xbf16>, vector<12x4xbf16>, vector<12x4xbf16>, vector<12x4xbf16>, vector<12x4xbf16> -> vector<12x20xbf16>
    %cst = arith.constant dense<0.000000e+00> : vector<12x8xf32>
    %10 = tpu.matmul %9, %2, %cst {dimension_numbers = #tpu.dot_dimension_numbers<[1], [0], [0], [1], [0, 0, 1, 1], [], []>} : vector<12x20xbf16>, vector<20x8xbf16>, vector<12x8xf32> -> vector<12x8xf32>
    %cst_6 = arith.constant dense<0xFF800000> : vector<8xf32>
    %11 = vector.multi_reduction <maximumf>, %10, %cst_6 [0] : vector<12x8xf32> to vector<8xf32>
    %12 = vector.shape_cast %11 : vector<8xf32> to vector<1x8xf32>
    %13 = arith.addf %12, %3 : vector<1x8xf32>
    %cst_7 = arith.constant 0.000000e+00 : f32
    %14 = vector.broadcast %cst_7 : f32 to vector<1x8xf32>
    %15 = arith.maximumf %13, %14 : vector<1x8xf32>
    %cst_8 = arith.constant 0.000000e+00 : f32
    %16 = vector.broadcast %cst_8 : f32 to vector<1x120xf32>
    %17 = tpu.concatenate %15, %16 in 1 : vector<1x8xf32>, vector<1x120xf32> -> vector<1x128xf32>
    %18 = vector.shape_cast %17 : vector<1x128xf32> to vector<1x1x128xf32>
    %19 = vector.shape_cast %18 : vector<1x1x128xf32> to vector<1x1x128xf32>
    %20 = vector.broadcast %19 : vector<1x1x128xf32> to vector<1x8x128xf32>
    %c0_9 = arith.constant 0 : index
    %c0_10 = arith.constant 0 : index
    %c0_11 = arith.constant 0 : index
    %21 = vector.load %arg4[%c0_9, %c0_10, %c0_11] : memref<1x8x128xf32, #tpu.memory_space<vmem>>, vector<1x8x128xf32>
    tpu.vector_store %arg4[%c0_9, %c0_10, %c0_11], %20 {strides = array<i32>} : memref<1x8x128xf32, #tpu.memory_space<vmem>>, vector<1x8x128xf32>,
    return
  }
  func.func @transform_0(%arg0: i32) -> (i32, i32, i32) {
    %c0_i32 = arith.constant 0 : i32
    %c0_i32_0 = arith.constant 0 : i32
    %c0_i32_1 = arith.constant 0 : i32
    return %arg0, %c0_i32, %c0_i32_0 : i32, i32, i32
  }
  func.func @transform_1(%arg0: i32) -> (i32, i32) {
    %c0_i32 = arith.constant 0 : i32
    %c0_i32_0 = arith.constant 0 : i32
    %c0_i32_1 = arith.constant 0 : i32
    return %c0_i32, %c0_i32_0 : i32, i32
  }
  func.func @transform_2(%arg0: i32) -> (i32, i32) {
    %c0_i32 = arith.constant 0 : i32
    %c0_i32_0 = arith.constant 0 : i32
    %c0_i32_1 = arith.constant 0 : i32
    return %c0_i32, %c0_i32_0 : i32, i32
  }
  func.func @transform_3(%arg0: i32) -> (i32, i32, i32) {
    %c0_i32 = arith.constant 0 : i32
    %c0_i32_0 = arith.constant 0 : i32
    %c0_i32_1 = arith.constant 0 : i32
    return %arg0, %c0_i32, %c0_i32_0 : i32, i32, i32
  }
}

</mosaic_0001>

<llo_original>
// kernel: tpu_custom_call.1
$region0: #{tpu_custom_call.1}
  #allocation0 [shape = 'u32[]', space=smem, size = 0x4, offset = 0x4, fixed_abs, tag = 'smem constant byte address 0x4 - core index']
  #allocation1 [shape = 'u32[144,128]{1,0:T(1,128)}', space=vmem, size = 0x12000, scoped, tag = 'internal scratch']
  %s0 = inlined_call_operand.vmem [shape: bf16[2,16,4], index: 0, kind: input, shape index: {}]
  %s1 = inlined_call_operand.vmem [shape: bf16[20,8], index: 1, kind: input, shape index: {}]
  %s2 = inlined_call_operand.vmem [shape: f32[1,8], index: 2, kind: input, shape index: {}]
  %s3 = inlined_call_operand.hbm [shape: f32[2,8,128], index: 3, kind: output, shape index: {}]
  %s4 = sld [smem:[#allocation0]]
  $region45: #{tpu_custom_call.1} parent=0
    _
  %s6 = ssub.s32 1, %s4
  %s7 = scalar_select 0, %s6, %s4
  $region1: #{tpu_custom_call.1} parent=0
    #allocation2 [shape = 'u8[8192]{0}', space=vmem, size = 0x2000, scoped, tag = 'output window, operand 0']
    #allocation3 [shape = 's32[2]{0}', space=sflag, size = 0x8, scoped, tag = 'scoped memory for tpu_custom_call.1']
    %8 = vsyncpa [#allocation3], 0
    %s9 = scalar_lea.sflag [#allocation3], 1
    %10 = vsyncpa %s9, 0
    loop: start=0, step=1, limit=4
    $region2: #{tpu_custom_call.1} parent=1 // loop_pre_header
      _
    $region3: #{tpu_custom_call.1} parent=1 // loop_header
      %s12 = sphi 0, %s16
      %p13 = scmp.ge.s32.totalorder %s12, 4
      %s22 = sphi 0, %s24
      %s25 = sphi 0, %s22
      %s26 = sphi 0, %s25
      %s42 = sphi 0, %s26
      %s46 = sphi 0, %s46
      %s48 = sphi 0, %s46
      %s49 = sphi 0, %s48
      %s63 = sphi 0, %s49
      %s67 = sphi 0, %s67
      %s69 = sphi 0, %s67
      %s70 = sphi 0, %s69
      %s84 = sphi 0, %s70
      %s90 = sphi 0, %s92
      %s93 = sphi 0, %s90
      %s94 = sphi 0, %s93
      %s110 = sphi 0, %s94
    $region4: #{tpu_custom_call.1} parent=1 // loop_header_branch
      %15 = sbr.rel (%p13) target = $region8
    $region5: #{tpu_custom_call.1} parent=1 // loop_body
      %s17 = ssub.s32 %s12, 1
      %s18 = ssub.s32 %s12, 2
      %s19 = sadd.s32 %s12, 1
      %s20 = ssub.s32 %s12, %s19
      %p21 = scmp.eq.s32.totalorder %s20, 0
      %s23 = sadd.s32 %s22, 1
      %s24 = scalar_select %p21, %s22, %s23
      %p27 = pneg %p21
      %p28 = scmp.eq.s32.totalorder %s12, 1
      %p29 = por %p27, %p28
      %p30 = scmp.ne.s32.totalorder %s22, %s25
      %p31 = scmp.eq.s32.totalorder %s12, 0
      %p32 = por %p30, %p31
      %p33 = scmp.ne.s32.totalorder %s22, %s25
      %p34 = scmp.eq.s32.totalorder %s17, 1
      %p35 = por %p33, %p34
      %p36 = scmp.ne.s32.totalorder %s25, %s26
      %p37 = scmp.eq.s32.totalorder %s17, 0
      %p38 = por %p36, %p37
      %p39 = scmp.ne.s32.totalorder %s25, %s26
      %p40 = scmp.eq.s32.totalorder %s18, 1
      %p41 = por %p39, %p40
      %p43 = scmp.ne.s32.totalorder %s26, %s42
      %p44 = scmp.eq.s32.totalorder %s18, 0
      %p45 = por %p43, %p44
      %s47 = sadd.s32 %s46, 1
      %p50 = scmp.eq.s32.totalorder %s12, 1
      %p51 = scmp.ne.s32.totalorder %s46, %s48
      %p52 = scmp.eq.s32.totalorder %s12, 0
      %p53 = por %p51, %p52
      %p54 = scmp.ne.s32.totalorder %s46, %s48
      %p55 = scmp.eq.s32.totalorder %s17, 1
      %p56 = por %p54, %p55
      %p57 = scmp.ne.s32.totalorder %s48, %s49
      %p58 = scmp.eq.s32.totalorder %s17, 0
      %p59 = por %p57, %p58
      %p60 = scmp.ne.s32.totalorder %s48, %s49
      %p61 = scmp.eq.s32.totalorder %s18, 1
      %p62 = por %p60, %p61
      %p64 = scmp.ne.s32.totalorder %s49, %s63
      %p65 = scmp.eq.s32.totalorder %s18, 0
      %p66 = por %p64, %p65
      %s68 = sadd.s32 %s67, 1
      %p71 = scmp.eq.s32.totalorder %s12, 1
      %p72 = scmp.ne.s32.totalorder %s67, %s69
      %p73 = scmp.eq.s32.totalorder %s12, 0
      %p74 = por %p72, %p73
      %p75 = scmp.ne.s32.totalorder %s67, %s69
      %p76 = scmp.eq.s32.totalorder %s17, 1
      %p77 = por %p75, %p76
      %p78 = scmp.ne.s32.totalorder %s69, %s70
      %p79 = scmp.eq.s32.totalorder %s17, 0
      %p80 = por %p78, %p79
      %p81 = scmp.ne.s32.totalorder %s69, %s70
      %p82 = scmp.eq.s32.totalorder %s18, 1
      %p83 = por %p81, %p82
      %p85 = scmp.ne.s32.totalorder %s70, %s84
      %p86 = scmp.eq.s32.totalorder %s18, 0
      %p87 = por %p85, %p86
      %s88 = ssub.s32 %s12, %s19
      %p89 = scmp.eq.s32.totalorder %s88, 0
      %s91 = sadd.s32 %s90, 1
      %s92 = scalar_select %p89, %s90, %s91
      %p95 = pneg %p89
      %p96 = scmp.eq.s32.totalorder %s12, 1
      %p97 = por %p95, %p96
      %p98 = scmp.ne.s32.totalorder %s90, %s93
      %p99 = scmp.eq.s32.totalorder %s12, 0
      %p100 = por %p98, %p99
      %p101 = scmp.ne.s32.totalorder %s90, %s93
      %p102 = scmp.eq.s32.totalorder %s17, 1
      %p103 = por %p101, %p102
      %p104 = scmp.ne.s32.totalorder %s93, %s94
      %p105 = scmp.eq.s32.totalorder %s17, 0
      %p106 = por %p104, %p105
      %p107 = scmp.ne.s32.totalorder %s93, %s94
      %p108 = scmp.eq.s32.totalorder %s18, 1
      %p109 = por %p107, %p108
      %p111 = scmp.ne.s32.totalorder %s94, %s110
      %p112 = scmp.eq.s32.totalorder %s18, 0
      %p113 = por %p111, %p112
      %p114 = scmp.le.s32.totalorder 1, %s12
      %p115 = scmp.lt.s32.totalorder %s12, 3
      %p116 = pnand %p114, %p115
      %p117 = pneg %p116
      // Predicated region
      $region9: #{tpu_custom_call.1} parent=5 // pred_check
        _
      $region10: #{tpu_custom_call.1} parent=5 // pred_check_branch
        %119 = sbr.rel (%p116) target = $region12
      $region11: #{tpu_custom_call.1} parent=5 // pred_region
        %s120 = ssub.s32 %s12, 1
        // Predicated region
        $region13: #{tpu_custom_call.1} parent=11 // pred_check
          %p121 = pneg %p59
        $region14: #{tpu_custom_call.1} parent=11 // pred_check_branch
          %123 = sbr.rel (%p121) target = $region16
        $region15: #{tpu_custom_call.1} parent=11 // pred_region
          _
        $region16: #{tpu_custom_call.1} parent=11 // pred_fallthru
          _
        // Predicated region
        $region17: #{tpu_custom_call.1} parent=11 // pred_check
          %p124 = pneg %p80
        $region18: #{tpu_custom_call.1} parent=11 // pred_check_branch
          %126 = sbr.rel (%p124) target = $region20
        $region19: #{tpu_custom_call.1} parent=11 // pred_region
          _
        $region20: #{tpu_custom_call.1} parent=11 // pred_fallthru
          _
      $region12: #{tpu_custom_call.1} parent=5 // pred_fallthru
        _
      %p127 = scmp.lt.s32.totalorder %s12, 2
      // Predicated region
      $region21: #{tpu_custom_call.1} parent=5 // pred_check
        %p128 = pneg %p127
      $region22: #{tpu_custom_call.1} parent=5 // pred_check_branch
        %130 = sbr.rel (%p128) target = $region24
      $region23: #{tpu_custom_call.1} parent=5 // pred_region
        // Predicated region
        $region25: #{tpu_custom_call.1} parent=23 // pred_check
          %p131 = pneg %p32
        $region26: #{tpu_custom_call.1} parent=23 // pred_check_branch
          %133 = sbr.rel (%p131) target = $region28
        $region27: #{tpu_custom_call.1} parent=23 // pred_region
          %p134 = scmp.lt.s32.totalorder %s12, 1
          %s135 = scalar_select %p134, %s12, 1
          %s136 = smul.addr %s135, 2
          %s137 = smul.addr %s136, 4
          %s138 = scalar_lea.vmem %s0, %s137
        $region28: #{tpu_custom_call.1} parent=23 // pred_fallthru
          _
      $region24: #{tpu_custom_call.1} parent=5 // pred_fallthru
        _
      %p139 = scmp.le.s32.totalorder 1, %s12
      %p140 = scmp.lt.s32.totalorder %s12, 3
      %p141 = pnand %p139, %p140
      %p142 = pneg %p141
      // Predicated region
      $region29: #{tpu_custom_call.1} parent=5 // pred_check
        _
      $region30: #{tpu_custom_call.1} parent=5 // pred_check_branch
        %144 = sbr.rel (%p141) target = $region32
      $region31: #{tpu_custom_call.1} parent=5 // pred_region
        %s145 = ssub.s32 %s12, 1
        %p146 = scmp.lt.s32.totalorder %s17, 1
        %s147 = scalar_select %p146, %s17, 1
        %s148 = smul.addr %s147, 2
        %s149 = smul.addr %s148, 4
        %s150 = scalar_lea.vmem %s0, %s149
        %p151 = pneg %p38
        %p152 = pneg %p35
        %p153 = pneg %p59
        %p154 = pneg %p56
        %p155 = pneg %p80
        %p156 = pneg %p77
        %p157 = pneg %p106
        %p158 = pneg %p103
        %s159 = sand.u32 %s93, 1
        %s160 = scalar_lea.sflag [#allocation3], %s159
        %s161 = sand.u32 %s93, 1
        %s162 = smul.addr %s161, 8
        %s163 = scalar_lea.vmem [#allocation2], %s162
        %p164 = scmp.lt.s32.totalorder %s17, 1
        %s165 = scalar_select %p164, %s17, 1
        %s166 = smul.addr %s165, 2
        %s167 = smul.addr %s166, 4
        %s168 = scalar_lea.vmem %s0, %s167
        %v170 = vld [vmem:[%s168] sm:$0xf]
        %v171 = vld [vmem:[%s168 + $0x4] sm:$0xf]
        %v172 = vld [vmem:[%s1] sm:$0xf]
        %v173 = vld [vmem:[%s1 + $0x4] sm:$0xf]
        %v174 = vld [vmem:[%s1 + $0x8] sm:$0x3]
        %v175 = vld [vmem:[%s2] sm:$0x1]
        %v178 = vunpack.c.l.b16 %v170
        %v179 = vunpack.c.l.b16 %v171
        %v180 = vpack.c.b16 %v179, %v178
        %v182 = vshrl.u32 %v180, 16
        %v184 = vshll.u32 %v180, 16
        %v186 = vrot.slane %v184, 1
        %v187 = vor.u32 %v182, %v186
        %188 = vrot.lane.b32.xlu0 %v187, 4
        %v189 = vpop.permute.xlu0 %188
        %v190 = vrot.slane %v180, 1
        %191 = vrot.lane.b32.xlu0 %v190, 8
        %v192 = vpop.permute.xlu0 %191
        %v193 = vrot.slane %v182, 1
        %v194 = vrot.slane %v184, 2
        %v195 = vor.u32 %v193, %v194
        %196 = vrot.lane.b32.xlu0 %v195, 12
        %v197 = vpop.permute.xlu0 %196
        %v198 = vrot.slane %v180, 2
        %199 = vrot.lane.b32.xlu0 %v198, 16
        %v200 = vpop.permute.xlu0 %199
        %vm201 = vcmask 31744
        %v203 = vsel %vm201, %v180, %v189
        %vm204 = vcmask 64512
        %v206 = vsel %vm204, %v203, %v192
        %vm207 = vcmask 97280
        %v209 = vsel %vm207, %v206, %v197
        %vm210 = vcmask 130048
        %v212 = vsel %vm210, %v209, %v200
        %v216 = vunpack.c.l.b16 %v172
        %v217 = vunpack.c.l.b16 %v173
        %v218 = vunpack.c.l.b16 %v174
        %v219 = vpack.c.b16 %v217, %v216
        %v220 = vpack.c.b16 %v218, %v218
        %vm222 = vcmask 162816
        %v223 = vsel %vm222, %v212, 0
        %vm225 = vcmask 1041408
        %v227 = vsel %vm225, %v220, 0
        %229 = vmatprep.subr.bf16.mxu0 0
        %230 = vmatpush1.bf16.msra.mxu0 %v219
        %231 = vmatprep.subr.bf16.mxu0 0
        %232 = vmatpush1.bf16.msra.mxu0 %v227
        %233 = vmatprep.subr.bf16.mxu0 0
        %234 = vmatpush1.bf16.msra.mxu0 0
        %235 = vmatprep.subr.bf16.mxu0 0
        %236 = vmatpush1.bf16.msra.mxu0 0
        %237 = vmatprep.subr.bf16.mxu0 0
        %238 = vmatpush1.bf16.msra.mxu0 0
        %239 = vmatprep.subr.bf16.mxu0 0
        %240 = vmatpush1.bf16.msra.mxu0 0
        %241 = vmatprep.subr.bf16.mxu0 0
        %242 = vmatpush1.bf16.msra.mxu0 0
        %243 = vmatprep.subr.bf16.mxu0 0
        %244 = vmatpush1.bf16.msra.mxu0 0
        %245 = vmatprep.subr.bf16.mxu0 0
        %246 = vmatpush1.bf16.msra.mxu0 0
        %247 = vmatprep.subr.bf16.mxu0 0
        %248 = vmatpush1.bf16.msra.mxu0 0
        %249 = vmatprep.subr.bf16.mxu0 0
        %250 = vmatpush1.bf16.msra.mxu0 0
        %251 = vmatprep.subr.bf16.mxu0 0
        %252 = vmatpush1.bf16.msra.mxu0 0
        %253 = vmatprep.subr.bf16.mxu0 0
        %254 = vmatpush1.bf16.msra.mxu0 0
        %255 = vmatprep.subr.bf16.mxu0 0
        %256 = vmatpush1.bf16.msra.mxu0 0
        %257 = vmatprep.subr.bf16.mxu0 0
        %258 = vmatpush1.bf16.msra.mxu0 0
        %259 = vmatprep.subr.bf16.mxu0 0
        %260 = vmatpush1.bf16.msra.mxu0 0
        %261 = vmatprep.mubr.bf16.mxu0 0
        %262 = vmatmul.mubr.bf16.gmra.mrb[0].mxu0 %v223
        %v263 = vpop.f32.mrb[0].mxu0
        %v264 = vadd.f32 0.0, %v263
        %v265 = vpop.f32.mrb[0].mxu0
        %v266 = vpop.f32.mrb[0].mxu0
        %v267 = vadd.f32 0.0, %v266
        %v268 = vpop.f32.mrb[0].mxu0
        %269 = vdwg.mxu0
        %v270 = vsel %vm204, %v264, -inf
        %vm271 = vcmask 60416
        %v272 = vsel %vm271, %v267, -inf
        %v273 = vmax.f32 %v270, %v272
        %v274 = vrot.slane %v273, 4
        %v275 = vmax.f32 %v273, %v274
        %v276 = vrot.slane %v275, 2
        %v277 = vmax.f32 %v275, %v276
        %v278 = vrot.slane %v277, 1
        %v279 = vmax.f32 %v277, %v278
        %v280 = vadd.f32 %v279, %v175
        %v281 = vmax.f32 %v280, 0.0
        %v282 = vsel %vm204, %v281, 0.0
        %v283 = vlaneseq
        %v284 = vshrl.u32 %v283, 7
        %v285 = vsub.s32 0, %v284
        %v286 = vrot.slane %v282, %v285
        %287 = vst [vmem:[%s163] sm:$0xff] %v286
        %s288 = sand.u32 %s93, 1
        %s289 = scalar_lea.sflag [#allocation3], %s288
        %s290 = sand.u32 %s93, 1
        %s291 = smul.addr %s290, 8
        %s292 = scalar_lea.vmem [#allocation2], %s291
        // Predicated region
        $region33: #{tpu_custom_call.1} parent=31 // pred_check
          %p293 = pneg %p103
        $region34: #{tpu_custom_call.1} parent=31 // pred_check_branch
          %295 = sbr.rel (%p293) target = $region36
        $region35: #{tpu_custom_call.1} parent=31 // pred_region
          %s297 = ssub.s32 128, 128
          %298 = vsyncadd %s289, %s297
          %s299 = smul.addr %s17, 128
          %s300 = scalar_lea.hbm %s3, %s299
          %s302 = sshll.u32 %s292, 4
          %s303 = int_to_ptr.vmem [resolvable:$true] %s302
          %305 = dma.vmem_to_hbm [thread:$0]  %s303, 128, %s300, %s289
        $region36: #{tpu_custom_call.1} parent=31 // pred_fallthru
          _
      $region32: #{tpu_custom_call.1} parent=5 // pred_fallthru
        _
      %p306 = scmp.le.s32.totalorder 2, %s12
      // Predicated region
      $region37: #{tpu_custom_call.1} parent=5 // pred_check
        %p307 = pneg %p306
      $region38: #{tpu_custom_call.1} parent=5 // pred_check_branch
        %309 = sbr.rel (%p307) target = $region40
      $region39: #{tpu_custom_call.1} parent=5 // pred_region
        %s310 = ssub.s32 %s12, 2
        // Predicated region
        $region41: #{tpu_custom_call.1} parent=39 // pred_check
          %p311 = pneg %p109
        $region42: #{tpu_custom_call.1} parent=39 // pred_check_branch
          %313 = sbr.rel (%p311) target = $region44
        $region43: #{tpu_custom_call.1} parent=39 // pred_region
          %s314 = sand.u32 %s94, 1
          %s315 = scalar_lea.sflag [#allocation3], %s314
          %s316 = sand.u32 %s94, 1
          %s317 = smul.addr %s316, 8
          %s318 = scalar_lea.vmem [#allocation2], %s317
          %319 = dma.done %s315, 128
        $region44: #{tpu_custom_call.1} parent=39 // pred_fallthru
          _
      $region40: #{tpu_custom_call.1} parent=5 // pred_fallthru
        _
    $region6: #{tpu_custom_call.1} parent=1 // loop_footer
      %s16 = sadd.s32 1, %s12
    $region7: #{tpu_custom_call.1} parent=1 // loop_footer_branch
      %11 = sbr.rel target = $region3
    $region8: #{tpu_custom_call.1} parent=1 // loop_exit
      _
    %320 = vsyncpa [#allocation3], 1
    %s321 = scalar_lea.sflag [#allocation3], 1
    %322 = vsyncpa %s321, 1

</llo_original>
